<compile_context>
chip_gen: v6e
topology: v6e:2x2x1
jax: 0.10.0
libtpu: 0.0.40
codegen_flags: <defaults>
</compile_context>

<pallas_src>
import jax
import jax.numpy as jnp
from jax.experimental import pallas as pl
from jax.experimental.pallas import tpu as pltpu

_H1, _H2, _C = 64, 32, 2


def _mlp_sigmoid_kernel(x_ref, w1_ref, b1_ref, w2_ref, b2_ref, wd_ref, bd_ref, o_ref):
    x = x_ref[...]
    cdt = x.dtype                     # MXU input dtype (bf16 by default)

    # fc1 + ReLU
    h1 = jnp.dot(x, w1_ref[...], preferred_element_type=jnp.float32)
    h1 = jnp.maximum(h1 + b1_ref[...], 0.0)

    # fc2 + ReLU
    h2 = jnp.dot(h1.astype(cdt), w2_ref[...], preferred_element_type=jnp.float32)
    h2 = jnp.maximum(h2 + b2_ref[...], 0.0)

    # fc3 + 2-class softmax: p0 = softmax(z)[:, 0] = sigmoid(z0 - z1) (exact).
    dd = jnp.dot(h2.astype(cdt), wd_ref[...], preferred_element_type=jnp.float32)
    dd = dd + bd_ref[...]
    o_ref[...] = (1.0 / (1.0 + jnp.exp(-dd))).astype(o_ref.dtype)


def _vmem_capacity_bytes():
    try:
        return int(pltpu.get_tpu_info().vmem_capacity_bytes)
    except Exception:
        return 64 * 1024 * 1024      # v7x per-TC VMEM is the smallest across generations


def _round16(n):
    return ((n + 15) // 16) * 16


def _pick_batch_tile(rows, pf, p, vmem_bytes):
    """Largest packed-row tile that keeps x/h/out comfortably in VMEM, with
    >= 2 grid steps when possible so both v7x TensorCores get work."""
    budget = vmem_bytes // 2
    per_row = 2 * pf * 2              # double-buffered bf16 x tile
    per_row += 6 * p * (_H1 + _H2)    # h1/h2 f32 values + bf16 copies
    per_row += 2 * 128 * 4            # lane-padded f32 out double buffer
    tb = max(16, min(4096, (budget // per_row // 16) * 16))
    if rows > 16:   # prefer >= 2 grid steps (v7x TC sharding); no cost on 1-TC chips
        tb = min(tb, max(16, _round16(pl.cdiv(rows, 2))))
    return rows if rows <= tb else tb


def _vmem_limit_bytes(tb, pf, p):
    x_bytes = 2 * tb * pf * 2                        # double-buffered bf16 x
    h_bytes = 6 * tb * p * (_H1 + _H2)               # h1/h2 temporaries
    out_bytes = 2 * tb * 128 * 4                     # lane-padded out double buffer
    w_bytes = 4 * (pf * p * _H1 + p * _H1 * p * _H2 + p * _H2 * p) + 3 * 8 * 128 * 4
    total = x_bytes + h_bytes + out_bytes + w_bytes + (8 << 20)   # compiler headroom
    return int(min(max(total, 16 << 20), 48 << 20))  # never request full 64 MiB (v7x)


def covariate_shift_classifier(x, params, *, batch_tile=None, use_bf16=True):
    """x: [B, input_size] float32. params: pre-transposed [in, out] weights and
    [1, out] biases. Returns softmax probabilities of shape [B, 2] (float32)."""
    x = x.astype(jnp.float32)
    B, F = x.shape
    cdt = jnp.bfloat16 if use_bf16 else jnp.float32

    # Row-packing factor: fold P rows into one MXU pass when F is small.
    if F <= 64:
        P = 4
    elif F <= 128:
        P = 2
    else:
        P = 1

    w1, b1 = params["w1"], params["b1"]          # [F, 64], [1, 64]
    w2, b2 = params["w2"], params["b2"]          # [64, 32], [1, 32]
    w3, b3 = params["w3"], params["b3"]          # [32, 2], [1, 2]

    # Fold the 2-class softmax into the last layer: only the p0 column.
    wd0 = w3[:, 0:1] - w3[:, 1:2]                # [32, 1]
    bd0 = b3[:, 0:1] - b3[:, 1:2]                # [1, 1]

    # Block-diagonal packing of the weights (no-op when P == 1).
    eye = jnp.eye(P, dtype=jnp.float32)
    w1p = jnp.kron(eye, w1).astype(cdt)          # [P*F,  P*64]
    w2p = jnp.kron(eye, w2).astype(cdt)          # [P*64, P*32]
    wdp = jnp.kron(eye, wd0).astype(cdt)         # [P*32, P]
    b1p = jnp.tile(b1, (1, P)).astype(jnp.float32)
    b2p = jnp.tile(b2, (1, P)).astype(jnp.float32)
    bdp = jnp.tile(bd0, (1, P)).astype(jnp.float32)

    # Pack P batch rows per packed row (free row-major reshape); pad B up to P.
    Bp = pl.cdiv(B, P) * P
    if Bp != B:
        x = jnp.pad(x, ((0, Bp - B), (0, 0)))
    rows, pf = Bp // P, P * F
    xp = x.reshape(rows, pf).astype(cdt)

    vmem_cap = _vmem_capacity_bytes()
    tb = batch_tile if batch_tile is not None else _pick_batch_tile(rows, pf, P, vmem_cap)
    grid = (pl.cdiv(rows, tb),)

    # Deeper x pipeline only on big-VMEM chips (v5e/v6e) with a large x tile.
    x_tile_bytes = tb * pf * jnp.dtype(cdt).itemsize
    if vmem_cap >= (96 << 20) and x_tile_bytes >= (4 << 20):
        x_spec = pl.BlockSpec((tb, pf), lambda i: (i, 0), pipeline_mode=pl.Buffered(3))
    else:
        x_spec = pl.BlockSpec((tb, pf), lambda i: (i, 0))

    # Note: a partial last tile computes on padded (garbage) rows; rows are fully
    # independent and the out-of-bounds writeback is masked, so valid rows are safe.
    p0 = pl.pallas_call(
        _mlp_sigmoid_kernel,
        out_shape=jax.ShapeDtypeStruct((rows, P), jnp.float32),
        grid=grid,
        in_specs=[
            x_spec,                                           # x: streamed per tile
            pl.BlockSpec((pf, P * _H1), lambda i: (0, 0)),    # weights/biases: resident
            pl.BlockSpec((1, P * _H1), lambda i: (0, 0)),
            pl.BlockSpec((P * _H1, P * _H2), lambda i: (0, 0)),
            pl.BlockSpec((1, P * _H2), lambda i: (0, 0)),
            pl.BlockSpec((P * _H2, P), lambda i: (0, 0)),
            pl.BlockSpec((1, P), lambda i: (0, 0)),
        ],
        out_specs=pl.BlockSpec((tb, P), lambda i: (i, 0)),
        compiler_params=pltpu.CompilerParams(
            dimension_semantics=("parallel",),                # shards batch across TCs on v7x
            vmem_limit_bytes=_vmem_limit_bytes(tb, pf, P),
        ),
    )(xp, w1p, b1p, w2p, b2p, wdp, bdp)

    p0 = p0.reshape(Bp)[:B]
    return jnp.stack([p0, 1.0 - p0], axis=1)     # p1 = 1 - p0 (sums to 1 by construction)


def init_params(key, input_size):
    """PyTorch-Linear-style uniform init, stored pre-transposed as [in, out]."""
    ks = jax.random.split(key, 6)

    def linear_init(kw, kb, fan_in, fan_out):
        bound = float(fan_in) ** -0.5
        w = jax.random.uniform(kw, (fan_in, fan_out), jnp.float32, -bound, bound)
        b = jax.random.uniform(kb, (1, fan_out), jnp.float32, -bound, bound)
        return w, b

    w1, b1 = linear_init(ks[0], ks[1], input_size, _H1)
    w2, b2 = linear_init(ks[2], ks[3], _H1, _H2)
    w3, b3 = linear_init(ks[4], ks[5], _H2, _C)
    return {"w1": w1, "b1": b1, "w2": w2, "b2": b2, "w3": w3, "b3": b3}


if __name__ == "__main__":
    key = jax.random.PRNGKey(0)
    k_param, k_x = jax.random.split(key)

    input_size = 32
    batch = 16

    params = init_params(k_param, input_size)
    x = jax.random.normal(k_x, (batch, input_size), jnp.float32)

    out = jax.block_until_ready(covariate_shift_classifier(x, params))

    # Reference in plain f32 JAX (params are already [in, out] / [1, out]).
    h1 = jnp.maximum(x @ params["w1"] + params["b1"], 0.0)
    h2 = jnp.maximum(h1 @ params["w2"] + params["b2"], 0.0)
    ref = jax.nn.softmax(h2 @ params["w3"] + params["b3"], axis=1)

    assert out.shape == (batch, 2)
    assert bool(jnp.all(jnp.isfinite(out)))
    assert jnp.allclose(jnp.sum(out, axis=1), 1.0, atol=1e-5)
    # bf16 MXU inputs with f32 accumulation: tolerance looser than a pure-f32 path.
    assert jnp.allclose(out, ref, atol=2e-2, rtol=0.0)

    print("KERNEL_OK")
</pallas_src>

<mosaic_0001>
module attributes {stable_mosaic.version = 11 : i64} {
  func.func @_mlp_sigmoid_kernel(%arg0: i32, %arg1: memref<4x128xbf16, #tpu.memory_space<vmem>>, %arg2: memref<128x256xbf16, #tpu.memory_space<vmem>>, %arg3: memref<1x256xf32, #tpu.memory_space<vmem>>, %arg4: memref<256x128xbf16, #tpu.memory_space<vmem>>, %arg5: memref<1x128xf32, #tpu.memory_space<vmem>>, %arg6: memref<128x4xbf16, #tpu.memory_space<vmem>>, %arg7: memref<1x4xf32, #tpu.memory_space<vmem>>, %arg8: memref<4x4xf32, #tpu.memory_space<vmem>>) attributes {dimension_semantics = [#tpu.dimension_semantics<parallel>], iteration_bounds = array<i64: 1>, scalar_prefetch = 0 : i64, scratch_operands = 0 : i64, tpu.core_type = #tpu.core_type<tc>, window_params = [{transform_indices = @transform_0, window_bounds = array<i64: 4, 128>}, {pipeline_mode = #tpu.pipeline_mode<synchronous>, transform_indices = @transform_1, window_bounds = array<i64: 128, 256>}, {pipeline_mode = #tpu.pipeline_mode<synchronous>, transform_indices = @transform_2, window_bounds = array<i64: 1, 256>}, {pipeline_mode = #tpu.pipeline_mode<synchronous>, transform_indices = @transform_3, window_bounds = array<i64: 256, 128>}, {pipeline_mode = #tpu.pipeline_mode<synchronous>, transform_indices = @transform_4, window_bounds = array<i64: 1, 128>}, {pipeline_mode = #tpu.pipeline_mode<synchronous>, transform_indices = @transform_5, window_bounds = array<i64: 128, 4>}, {pipeline_mode = #tpu.pipeline_mode<synchronous>, transform_indices = @transform_6, window_bounds = array<i64: 1, 4>}, {transform_indices = @transform_7, window_bounds = array<i64: 4, 4>}]} {
    %c0 = arith.constant 0 : index
    %c0_0 = arith.constant 0 : index
    %0 = vector.load %arg1[%c0, %c0_0] : memref<4x128xbf16, #tpu.memory_space<vmem>>, vector<4x128xbf16>
    %c0_1 = arith.constant 0 : index
    %c0_2 = arith.constant 0 : index
    %1 = vector.load %arg2[%c0_1, %c0_2] : memref<128x256xbf16, #tpu.memory_space<vmem>>, vector<128x256xbf16>
    %cst = arith.constant dense<0.000000e+00> : vector<4x256xf32>
    %2 = tpu.matmul %0, %1, %cst {dimension_numbers = #tpu.dot_dimension_numbers<[1], [0], [0], [1], [0, 0, 1, 1], [], []>} : vector<4x128xbf16>, vector<128x256xbf16>, vector<4x256xf32> -> vector<4x256xf32>
    %c0_3 = arith.constant 0 : index
    %c0_4 = arith.constant 0 : index
    %3 = vector.load %arg3[%c0_3, %c0_4] : memref<1x256xf32, #tpu.memory_space<vmem>>, vector<1x256xf32>
    %4 = vector.broadcast %3 : vector<1x256xf32> to vector<4x256xf32>
    %5 = arith.addf %2, %4 : vector<4x256xf32>
    %cst_5 = arith.constant 0.000000e+00 : f32
    %6 = vector.broadcast %cst_5 : f32 to vector<4x256xf32>
    %7 = arith.maximumf %5, %6 : vector<4x256xf32>
    %8 = arith.truncf %7 : vector<4x256xf32> to vector<4x256xbf16>
    %c0_6 = arith.constant 0 : index
    %c0_7 = arith.constant 0 : index
    %9 = vector.load %arg4[%c0_6, %c0_7] : memref<256x128xbf16, #tpu.memory_space<vmem>>, vector<256x128xbf16>
    %cst_8 = arith.constant dense<0.000000e+00> : vector<4x128xf32>
    %10 = tpu.matmul %8, %9, %cst_8 {dimension_numbers = #tpu.dot_dimension_numbers<[1], [0], [0], [1], [0, 0, 1, 1], [], []>} : vector<4x256xbf16>, vector<256x128xbf16>, vector<4x128xf32> -> vector<4x128xf32>
    %c0_9 = arith.constant 0 : index
    %c0_10 = arith.constant 0 : index
    %11 = vector.load %arg5[%c0_9, %c0_10] : memref<1x128xf32, #tpu.memory_space<vmem>>, vector<1x128xf32>
    %12 = vector.broadcast %11 : vector<1x128xf32> to vector<4x128xf32>
    %13 = arith.addf %10, %12 : vector<4x128xf32>
    %cst_11 = arith.constant 0.000000e+00 : f32
    %14 = vector.broadcast %cst_11 : f32 to vector<4x128xf32>
    %15 = arith.maximumf %13, %14 : vector<4x128xf32>
    %16 = arith.truncf %15 : vector<4x128xf32> to vector<4x128xbf16>
    %c0_12 = arith.constant 0 : index
    %c0_13 = arith.constant 0 : index
    %17 = vector.load %arg6[%c0_12, %c0_13] : memref<128x4xbf16, #tpu.memory_space<vmem>>, vector<128x4xbf16>
    %cst_14 = arith.constant dense<0.000000e+00> : vector<4x4xf32>
    %18 = tpu.matmul %16, %17, %cst_14 {dimension_numbers = #tpu.dot_dimension_numbers<[1], [0], [0], [1], [0, 0, 1, 1], [], []>} : vector<4x128xbf16>, vector<128x4xbf16>, vector<4x4xf32> -> vector<4x4xf32>
    %c0_15 = arith.constant 0 : index
    %c0_16 = arith.constant 0 : index
    %19 = vector.load %arg7[%c0_15, %c0_16] : memref<1x4xf32, #tpu.memory_space<vmem>>, vector<1x4xf32>
    %20 = vector.broadcast %19 : vector<1x4xf32> to vector<4x4xf32>
    %21 = arith.addf %18, %20 : vector<4x4xf32>
    %cst_17 = arith.constant 0.000000e+00 : f32
    %22 = vector.broadcast %cst_17 : f32 to vector<4x4xf32>
    %23 = arith.subf %22, %21 : vector<4x4xf32>
    %24 = math.exp %23 : vector<4x4xf32>
    %cst_18 = arith.constant 1.000000e+00 : f32
    %25 = vector.broadcast %cst_18 : f32 to vector<4x4xf32>
    %26 = arith.addf %25, %24 : vector<4x4xf32>
    %cst_19 = arith.constant 1.000000e+00 : f32
    %27 = vector.broadcast %cst_19 : f32 to vector<4x4xf32>
    %28 = arith.divf %27, %26 : vector<4x4xf32>
    %c0_20 = arith.constant 0 : index
    %c0_21 = arith.constant 0 : index
    %29 = vector.load %arg8[%c0_20, %c0_21] : memref<4x4xf32, #tpu.memory_space<vmem>>, vector<4x4xf32>
    tpu.vector_store %arg8[%c0_20, %c0_21], %28 {strides = array<i32>} : memref<4x4xf32, #tpu.memory_space<vmem>>, vector<4x4xf32>,
    return
  }
  func.func @transform_0(%arg0: i32) -> (i32, i32) {
    %c0_i32 = arith.constant 0 : i32
    %c0_i32_0 = arith.constant 0 : i32
    return %arg0, %c0_i32 : i32, i32
  }
  func.func @transform_1(%arg0: i32) -> (i32, i32) {
    %c0_i32 = arith.constant 0 : i32
    %c0_i32_0 = arith.constant 0 : i32
    %c0_i32_1 = arith.constant 0 : i32
    return %c0_i32, %c0_i32_0 : i32, i32
  }
  func.func @transform_2(%arg0: i32) -> (i32, i32) {
    %c0_i32 = arith.constant 0 : i32
    %c0_i32_0 = arith.constant 0 : i32
    %c0_i32_1 = arith.constant 0 : i32
    return %c0_i32, %c0_i32_0 : i32, i32
  }
  func.func @transform_3(%arg0: i32) -> (i32, i32) {
    %c0_i32 = arith.constant 0 : i32
    %c0_i32_0 = arith.constant 0 : i32
    %c0_i32_1 = arith.constant 0 : i32
    return %c0_i32, %c0_i32_0 : i32, i32
  }
  func.func @transform_4(%arg0: i32) -> (i32, i32) {
    %c0_i32 = arith.constant 0 : i32
    %c0_i32_0 = arith.constant 0 : i32
    %c0_i32_1 = arith.constant 0 : i32
    return %c0_i32, %c0_i32_0 : i32, i32
  }
  func.func @transform_5(%arg0: i32) -> (i32, i32) {
    %c0_i32 = arith.constant 0 : i32
    %c0_i32_0 = arith.constant 0 : i32
    %c0_i32_1 = arith.constant 0 : i32
    return %c0_i32, %c0_i32_0 : i32, i32
  }
  func.func @transform_6(%arg0: i32) -> (i32, i32) {
    %c0_i32 = arith.constant 0 : i32
    %c0_i32_0 = arith.constant 0 : i32
    %c0_i32_1 = arith.constant 0 : i32
    return %c0_i32, %c0_i32_0 : i32, i32
  }
  func.func @transform_7(%arg0: i32) -> (i32, i32) {
    %c0_i32 = arith.constant 0 : i32
    %c0_i32_0 = arith.constant 0 : i32
    return %arg0, %c0_i32 : i32, i32
  }
}

</mosaic_0001>

<llo_original>
// kernel: tpu_custom_call.1
$region0: #{tpu_custom_call.1}
  #allocation0 [shape = 'u32[]', space=smem, size = 0x4, offset = 0x4, fixed_abs, tag = 'smem constant byte address 0x4 - core index']
  #allocation1 [shape = 'u32[144,128]{1,0:T(1,128)}', space=vmem, size = 0x12000, scoped, tag = 'internal scratch']
  %s0 = inlined_call_operand.vmem [shape: bf16[4,128], index: 0, kind: input, shape index: {}]
  %s1 = inlined_call_operand.hbm [shape: bf16[128,256], index: 1, kind: input, shape index: {}]
  %s2 = inlined_call_operand.vmem [shape: f32[1,256], index: 2, kind: input, shape index: {}]
  %s3 = inlined_call_operand.hbm [shape: bf16[256,128], index: 3, kind: input, shape index: {}]
  %s4 = inlined_call_operand.vmem [shape: f32[1,128], index: 4, kind: input, shape index: {}]
  %s5 = inlined_call_operand.vmem [shape: bf16[128,4], index: 5, kind: input, shape index: {}]
  %s6 = inlined_call_operand.vmem [shape: f32[1,4], index: 6, kind: input, shape index: {}]
  %s7 = inlined_call_operand.hbm [shape: f32[4,4], index: 7, kind: output, shape index: {}]
  %s8 = sld [smem:[#allocation0]]
  $region46: #{tpu_custom_call.1} parent=0
    _
  %s10 = ssub.s32 1, %s8
  %s11 = scalar_select 0, %s10, %s8
  $region1: #{tpu_custom_call.1} parent=0
    #allocation2 [shape = 'u8[65536]{0}', space=vmem, size = 0x10000, scoped, tag = 'input window, operand 1, single buffered']
    #allocation3 [shape = 's32[1]{0}', space=sflag, size = 0x4, scoped, tag = 'scoped memory for tpu_custom_call.1']
    #allocation4 [shape = 's32[1]{0}', space=sflag, size = 0x4, scoped, tag = 'scoped memory for tpu_custom_call.1']
    #allocation5 [shape = 'u8[65536]{0}', space=vmem, size = 0x10000, scoped, tag = 'input window, operand 3, single buffered']
    #allocation6 [shape = 's32[1]{0}', space=sflag, size = 0x4, scoped, tag = 'scoped memory for tpu_custom_call.1']
    #allocation7 [shape = 'u8[2048]{0}', space=vmem, size = 0x800, scoped, tag = 'output window, operand 0, single buffered']
    %12 = vsyncpa [#allocation3], 0
    %13 = vsyncpa [#allocation6], 0
    %14 = vsyncpa [#allocation4], 0
    // Predicated region
    $region2: #{tpu_custom_call.1} parent=1 // pred_check
      _
    $region3: #{tpu_custom_call.1} parent=1 // pred_check_branch
      %16 = sbr.rel (0) target = $region5
    $region4: #{tpu_custom_call.1} parent=1 // pred_region
      _
    $region5: #{tpu_custom_call.1} parent=1 // pred_fallthru
      _
    // Predicated region
    $region6: #{tpu_custom_call.1} parent=1 // pred_check
      _
    $region7: #{tpu_custom_call.1} parent=1 // pred_check_branch
      %18 = sbr.rel (0) target = $region9
    $region8: #{tpu_custom_call.1} parent=1 // pred_region
      %s20 = ssub.s32 2048, 2048
      %21 = vsyncadd [#allocation3], %s20
      %s22 = sshll.u32 [#allocation2], 4
      %s23 = int_to_ptr.vmem [resolvable:$true] %s22
      %28 = dma.hbm_to_vmem [thread:$0]  %s1, 2048, %s23, [#allocation3], 128, 128, 8
    $region9: #{tpu_custom_call.1} parent=1 // pred_fallthru
      _
    // Predicated region
    $region10: #{tpu_custom_call.1} parent=1 // pred_check
      _
    $region11: #{tpu_custom_call.1} parent=1 // pred_check_branch
      %30 = sbr.rel (0) target = $region13
    $region12: #{tpu_custom_call.1} parent=1 // pred_region
      _
    $region13: #{tpu_custom_call.1} parent=1 // pred_fallthru
      _
    // Predicated region
    $region14: #{tpu_custom_call.1} parent=1 // pred_check
      _
    $region15: #{tpu_custom_call.1} parent=1 // pred_check_branch
      %32 = sbr.rel (0) target = $region17
    $region16: #{tpu_custom_call.1} parent=1 // pred_region
      %s34 = ssub.s32 2048, 2048
      %35 = vsyncadd [#allocation6], %s34
      %s36 = sshll.u32 [#allocation5], 4
      %s37 = int_to_ptr.vmem [resolvable:$true] %s36
      %42 = dma.hbm_to_vmem [thread:$0]  %s3, 2048, %s37, [#allocation6], 64, 64, 4
    $region17: #{tpu_custom_call.1} parent=1 // pred_fallthru
      _
    // Predicated region
    $region18: #{tpu_custom_call.1} parent=1 // pred_check
      _
    $region19: #{tpu_custom_call.1} parent=1 // pred_check_branch
      %44 = sbr.rel (0) target = $region21
    $region20: #{tpu_custom_call.1} parent=1 // pred_region
      _
    $region21: #{tpu_custom_call.1} parent=1 // pred_fallthru
      _
    // Predicated region
    $region22: #{tpu_custom_call.1} parent=1 // pred_check
      _
    $region23: #{tpu_custom_call.1} parent=1 // pred_check_branch
      %46 = sbr.rel (0) target = $region25
    $region24: #{tpu_custom_call.1} parent=1 // pred_region
      _
    $region25: #{tpu_custom_call.1} parent=1 // pred_fallthru
      _
    // Predicated region
    $region26: #{tpu_custom_call.1} parent=1 // pred_check
      _
    $region27: #{tpu_custom_call.1} parent=1 // pred_check_branch
      %48 = sbr.rel (0) target = $region29
    $region28: #{tpu_custom_call.1} parent=1 // pred_region
      _
    $region29: #{tpu_custom_call.1} parent=1 // pred_fallthru
      _
    // Predicated region
    $region30: #{tpu_custom_call.1} parent=1 // pred_check
      _
    $region31: #{tpu_custom_call.1} parent=1 // pred_check_branch
      %50 = sbr.rel (0) target = $region33
    $region32: #{tpu_custom_call.1} parent=1 // pred_region
      %51 = dma.done [#allocation3], 2048
    $region33: #{tpu_custom_call.1} parent=1 // pred_fallthru
      _
    // Predicated region
    $region34: #{tpu_custom_call.1} parent=1 // pred_check
      _
    $region35: #{tpu_custom_call.1} parent=1 // pred_check_branch
      %53 = sbr.rel (0) target = $region37
    $region36: #{tpu_custom_call.1} parent=1 // pred_region
      %54 = dma.done [#allocation6], 2048
    $region37: #{tpu_custom_call.1} parent=1 // pred_fallthru
      _
    %v56 = vld [vmem:[%s0] sm:$0x3]
    %v57 = vld [vmem:[#allocation2] sm:$0xff]
    %v58 = vld [vmem:[#allocation2 + $0x8] sm:$0xff]
    %v59 = vld [vmem:[#allocation2 + $0x10] sm:$0xff]
    %v60 = vld [vmem:[#allocation2 + $0x18] sm:$0xff]
    %v61 = vld [vmem:[#allocation2 + $0x20] sm:$0xff]
    %v62 = vld [vmem:[#allocation2 + $0x28] sm:$0xff]
    %v63 = vld [vmem:[#allocation2 + $0x30] sm:$0xff]
    %v64 = vld [vmem:[#allocation2 + $0x38] sm:$0xff]
    %v65 = vld [vmem:[#allocation2 + $0x40] sm:$0xff]
    %v66 = vld [vmem:[#allocation2 + $0x48] sm:$0xff]
    %v67 = vld [vmem:[#allocation2 + $0x50] sm:$0xff]
    %v68 = vld [vmem:[#allocation2 + $0x58] sm:$0xff]
    %v69 = vld [vmem:[#allocation2 + $0x60] sm:$0xff]
    %v70 = vld [vmem:[#allocation2 + $0x68] sm:$0xff]
    %v71 = vld [vmem:[#allocation2 + $0x70] sm:$0xff]
    %v72 = vld [vmem:[#allocation2 + $0x78] sm:$0xff]
    %v73 = vld [vmem:[%s2] sm:$0x3]
    %v75 = vlaneseq
    %v76 = vshrl.u32 %v75, 7
    %v77 = vsub.s32 0, %v76
    %v78 = vrot.slane %v73, %v77
    %v79 = vlaneseq
    %v80 = vshrl.u32 %v79, 7
    %v81 = vsub.s32 1, %v80
    %v82 = vrot.slane %v73, %v81
    %v101 = vunpack.c.l.b16 %v57
    %v102 = vunpack.c.h.b16 %v57
    %v103 = vunpack.c.l.b16 %v58
    %v104 = vunpack.c.h.b16 %v58
    %v105 = vunpack.c.l.b16 %v59
    %v106 = vunpack.c.h.b16 %v59
    %v107 = vunpack.c.l.b16 %v60
    %v108 = vunpack.c.h.b16 %v60
    %v109 = vunpack.c.l.b16 %v61
    %v110 = vunpack.c.h.b16 %v61
    %v111 = vunpack.c.l.b16 %v62
    %v112 = vunpack.c.h.b16 %v62
    %v113 = vunpack.c.l.b16 %v63
    %v114 = vunpack.c.h.b16 %v63
    %v115 = vunpack.c.l.b16 %v64
    %v116 = vunpack.c.h.b16 %v64
    %v117 = vunpack.c.l.b16 %v65
    %v118 = vunpack.c.h.b16 %v65
    %v119 = vunpack.c.l.b16 %v66
    %v120 = vunpack.c.h.b16 %v66
    %v121 = vunpack.c.l.b16 %v67
    %v122 = vunpack.c.h.b16 %v67
    %v123 = vunpack.c.l.b16 %v68
    %v124 = vunpack.c.h.b16 %v68
    %v125 = vunpack.c.l.b16 %v69
    %v126 = vunpack.c.h.b16 %v69
    %v127 = vunpack.c.l.b16 %v70
    %v128 = vunpack.c.h.b16 %v70
    %v129 = vunpack.c.l.b16 %v71
    %v130 = vunpack.c.h.b16 %v71
    %v131 = vunpack.c.l.b16 %v72
    %v132 = vunpack.c.h.b16 %v72
    %v133 = vpack.c.b16 %v103, %v101
    %v134 = vpack.c.b16 %v104, %v102
    %v135 = vpack.c.b16 %v107, %v105
    %v136 = vpack.c.b16 %v108, %v106
    %v137 = vpack.c.b16 %v111, %v109
    %v138 = vpack.c.b16 %v112, %v110
    %v139 = vpack.c.b16 %v115, %v113
    %v140 = vpack.c.b16 %v116, %v114
    %v141 = vpack.c.b16 %v119, %v117
    %v142 = vpack.c.b16 %v120, %v118
    %v143 = vpack.c.b16 %v123, %v121
    %v144 = vpack.c.b16 %v124, %v122
    %v145 = vpack.c.b16 %v127, %v125
    %v146 = vpack.c.b16 %v128, %v126
    %v147 = vpack.c.b16 %v131, %v129
    %v148 = vpack.c.b16 %v132, %v130
    %165 = vmatprep.subr.bf16.mxu0 %v148
    %166 = vmatpush1.bf16.msra.mxu0 %v147
    %167 = vmatprep.subr.bf16.mxu0 %v146
    %168 = vmatpush1.bf16.msra.mxu0 %v145
    %169 = vmatprep.subr.bf16.mxu0 %v144
    %170 = vmatpush1.bf16.msra.mxu0 %v143
    %171 = vmatprep.subr.bf16.mxu0 %v142
    %172 = vmatpush1.bf16.msra.mxu0 %v141
    %173 = vmatprep.subr.bf16.mxu0 %v140
    %174 = vmatpush1.bf16.msra.mxu0 %v139
    %175 = vmatprep.subr.bf16.mxu0 %v138
    %176 = vmatpush1.bf16.msra.mxu0 %v137
    %177 = vmatprep.subr.bf16.mxu0 %v136
    %178 = vmatpush1.bf16.msra.mxu0 %v135
    %179 = vmatprep.subr.bf16.mxu0 %v134
    %180 = vmatpush1.bf16.msra.mxu0 %v133
    %181 = vmatprep.subr.bf16.mxu0 0
    %182 = vmatpush2.bf16.msra.mxu0 0
    %183 = vmatprep.subr.bf16.mxu0 0
    %184 = vmatpush2.bf16.msra.mxu0 0
    %185 = vmatprep.subr.bf16.mxu0 0
    %186 = vmatpush2.bf16.msra.mxu0 0
    %187 = vmatprep.subr.bf16.mxu0 0
    %188 = vmatpush2.bf16.msra.mxu0 0
    %189 = vmatprep.subr.bf16.mxu0 0
    %190 = vmatpush2.bf16.msra.mxu0 0
    %191 = vmatprep.subr.bf16.mxu0 0
    %192 = vmatpush2.bf16.msra.mxu0 0
    %193 = vmatprep.subr.bf16.mxu0 0
    %194 = vmatpush2.bf16.msra.mxu0 0
    %195 = vmatprep.subr.bf16.mxu0 0
    %196 = vmatpush2.bf16.msra.mxu0 0
    %197 = vmatprep.mubr.bf16.mxu0 0
    %198 = vmatmul.mubr.bf16.gmra.mxu0 %v56
    %v199 = vpop.f32.mrf.mxu0
    %v200 = vadd.f32 %v78, %v199
    %v201 = vpop.f32.mrf.mxu0
    %v202 = vadd.f32 %v82, %v201
    %v203 = vpop.f32.mrf.mxu0
    %v204 = vpop.f32.mrf.mxu0
    %205 = vdwg.mxu0
    %v206 = vmax.f32 %v200, 0.0
    %v207 = vmax.f32 %v202, 0.0
    %v208 = vpack.c.bf16 %v206, %v206
    %v209 = vpack.c.bf16 %v207, %v207
    %v210 = vld [vmem:[#allocation5] sm:$0xf]
    %v211 = vld [vmem:[#allocation5 + $0x4] sm:$0xf]
    %v212 = vld [vmem:[#allocation5 + $0x8] sm:$0xf]
    %v213 = vld [vmem:[#allocation5 + $0xc] sm:$0xf]
    %v214 = vld [vmem:[#allocation5 + $0x10] sm:$0xf]
    %v215 = vld [vmem:[#allocation5 + $0x14] sm:$0xf]
    %v216 = vld [vmem:[#allocation5 + $0x18] sm:$0xf]
    %v217 = vld [vmem:[#allocation5 + $0x1c] sm:$0xf]
    %v218 = vld [vmem:[#allocation5 + $0x20] sm:$0xf]
    %v219 = vld [vmem:[#allocation5 + $0x24] sm:$0xf]
    %v220 = vld [vmem:[#allocation5 + $0x28] sm:$0xf]
    %v221 = vld [vmem:[#allocation5 + $0x2c] sm:$0xf]
    %v222 = vld [vmem:[#allocation5 + $0x30] sm:$0xf]
    %v223 = vld [vmem:[#allocation5 + $0x34] sm:$0xf]
    %v224 = vld [vmem:[#allocation5 + $0x38] sm:$0xf]
    %v225 = vld [vmem:[#allocation5 + $0x3c] sm:$0xf]
    %v226 = vld [vmem:[#allocation5 + $0x40] sm:$0xf]
    %v227 = vld [vmem:[#allocation5 + $0x44] sm:$0xf]
    %v228 = vld [vmem:[#allocation5 + $0x48] sm:$0xf]
    %v229 = vld [vmem:[#allocation5 + $0x4c] sm:$0xf]
    %v230 = vld [vmem:[#allocation5 + $0x50] sm:$0xf]
    %v231 = vld [vmem:[#allocation5 + $0x54] sm:$0xf]
    %v232 = vld [vmem:[#allocation5 + $0x58] sm:$0xf]
    %v233 = vld [vmem:[#allocation5 + $0x5c] sm:$0xf]
    %v234 = vld [vmem:[#allocation5 + $0x60] sm:$0xf]
    %v235 = vld [vmem:[#allocation5 + $0x64] sm:$0xf]
    %v236 = vld [vmem:[#allocation5 + $0x68] sm:$0xf]
    %v237 = vld [vmem:[#allocation5 + $0x6c] sm:$0xf]
    %v238 = vld [vmem:[#allocation5 + $0x70] sm:$0xf]
    %v239 = vld [vmem:[#allocation5 + $0x74] sm:$0xf]
    %v240 = vld [vmem:[#allocation5 + $0x78] sm:$0xf]
    %v241 = vld [vmem:[#allocation5 + $0x7c] sm:$0xf]
    %v242 = vld [vmem:[%s4] sm:$0x1]
    %v244 = vlaneseq
    %v245 = vshrl.u32 %v244, 7
    %v246 = vsub.s32 0, %v245
    %v247 = vrot.slane %v242, %v246
    %v281 = vunpack.c.l.b16 %v210
    %v282 = vunpack.c.l.b16 %v211
    %v283 = vunpack.c.l.b16 %v212
    %v284 = vunpack.c.l.b16 %v213
    %v285 = vunpack.c.l.b16 %v214
    %v286 = vunpack.c.l.b16 %v215
    %v287 = vunpack.c.l.b16 %v216
    %v288 = vunpack.c.l.b16 %v217
    %v289 = vunpack.c.l.b16 %v218
    %v290 = vunpack.c.l.b16 %v219
    %v291 = vunpack.c.l.b16 %v220
    %v292 = vunpack.c.l.b16 %v221
    %v293 = vunpack.c.l.b16 %v222
    %v294 = vunpack.c.l.b16 %v223
    %v295 = vunpack.c.l.b16 %v224
    %v296 = vunpack.c.l.b16 %v225
    %v297 = vunpack.c.l.b16 %v226
    %v298 = vunpack.c.l.b16 %v227
    %v299 = vunpack.c.l.b16 %v228
    %v300 = vunpack.c.l.b16 %v229
    %v301 = vunpack.c.l.b16 %v230
    %v302 = vunpack.c.l.b16 %v231
    %v303 = vunpack.c.l.b16 %v232
    %v304 = vunpack.c.l.b16 %v233
    %v305 = vunpack.c.l.b16 %v234
    %v306 = vunpack.c.l.b16 %v235
    %v307 = vunpack.c.l.b16 %v236
    %v308 = vunpack.c.l.b16 %v237
    %v309 = vunpack.c.l.b16 %v238
    %v310 = vunpack.c.l.b16 %v239
    %v311 = vunpack.c.l.b16 %v240
    %v312 = vunpack.c.l.b16 %v241
    %v313 = vpack.c.b16 %v282, %v281
    %v314 = vpack.c.b16 %v284, %v283
    %v315 = vpack.c.b16 %v286, %v285
    %v316 = vpack.c.b16 %v288, %v287
    %v317 = vpack.c.b16 %v290, %v289
    %v318 = vpack.c.b16 %v292, %v291
    %v319 = vpack.c.b16 %v294, %v293
    %v320 = vpack.c.b16 %v296, %v295
    %v321 = vpack.c.b16 %v298, %v297
    %v322 = vpack.c.b16 %v300, %v299
    %v323 = vpack.c.b16 %v302, %v301
    %v324 = vpack.c.b16 %v304, %v303
    %v325 = vpack.c.b16 %v306, %v305
    %v326 = vpack.c.b16 %v308, %v307
    %v327 = vpack.c.b16 %v310, %v309
    %v328 = vpack.c.b16 %v312, %v311
    %345 = vmatprep.subr.bf16.mxu0 0
    %346 = vmatpush1.bf16.msra.mxu0 %v320
    %347 = vmatprep.subr.bf16.mxu0 0
    %348 = vmatpush1.bf16.msra.mxu0 %v319
    %349 = vmatprep.subr.bf16.mxu0 0
    %350 = vmatpush1.bf16.msra.mxu0 %v318
    %351 = vmatprep.subr.bf16.mxu0 0
    %352 = vmatpush1.bf16.msra.mxu0 %v317
    %353 = vmatprep.subr.bf16.mxu0 0
    %354 = vmatpush1.bf16.msra.mxu0 %v316
    %355 = vmatprep.subr.bf16.mxu0 0
    %356 = vmatpush1.bf16.msra.mxu0 %v315
    %357 = vmatprep.subr.bf16.mxu0 0
    %358 = vmatpush1.bf16.msra.mxu0 %v314
    %359 = vmatprep.subr.bf16.mxu0 0
    %360 = vmatpush1.bf16.msra.mxu0 %v313
    %361 = vmatprep.subr.bf16.mxu0 0
    %362 = vmatpush2.bf16.msra.mxu0 %v328
    %363 = vmatprep.subr.bf16.mxu0 0
    %364 = vmatpush2.bf16.msra.mxu0 %v327
    %365 = vmatprep.subr.bf16.mxu0 0
    %366 = vmatpush2.bf16.msra.mxu0 %v326
    %367 = vmatprep.subr.bf16.mxu0 0
    %368 = vmatpush2.bf16.msra.mxu0 %v325
    %369 = vmatprep.subr.bf16.mxu0 0
    %370 = vmatpush2.bf16.msra.mxu0 %v324
    %371 = vmatprep.subr.bf16.mxu0 0
    %372 = vmatpush2.bf16.msra.mxu0 %v323
    %373 = vmatprep.subr.bf16.mxu0 0
    %374 = vmatpush2.bf16.msra.mxu0 %v322
    %375 = vmatprep.subr.bf16.mxu0 0
    %376 = vmatpush2.bf16.msra.mxu0 %v321
    %377 = vmatprep.mubr.bf16.mxu0 %v209
    %378 = vmatmul.mubr.bf16.gmra.mxu0 %v208
    %v379 = vpop.f32.mrf.mxu0
    %v380 = vadd.f32 %v247, %v379
    %v381 = vpop.f32.mrf.mxu0
    %v382 = vpop.f32.mrf.mxu0
    %v383 = vpop.f32.mrf.mxu0
    %384 = vdwg.mxu0
    %v385 = vmax.f32 %v380, 0.0
    %v386 = vpack.c.bf16 %v385, %v385
    %v387 = vld [vmem:[%s5] sm:$0xf]
    %v388 = vld [vmem:[%s5 + $0x4] sm:$0xf]
    %v389 = vld [vmem:[%s5 + $0x8] sm:$0xf]
    %v390 = vld [vmem:[%s5 + $0xc] sm:$0xf]
    %v391 = vld [vmem:[%s5 + $0x10] sm:$0xf]
    %v392 = vld [vmem:[%s5 + $0x14] sm:$0xf]
    %v393 = vld [vmem:[%s5 + $0x18] sm:$0xf]
    %v394 = vld [vmem:[%s5 + $0x1c] sm:$0xf]
    %v395 = vld [vmem:[%s5 + $0x20] sm:$0xf]
    %v396 = vld [vmem:[%s5 + $0x24] sm:$0xf]
    %v397 = vld [vmem:[%s5 + $0x28] sm:$0xf]
    %v398 = vld [vmem:[%s5 + $0x2c] sm:$0xf]
    %v399 = vld [vmem:[%s5 + $0x30] sm:$0xf]
    %v400 = vld [vmem:[%s5 + $0x34] sm:$0xf]
    %v401 = vld [vmem:[%s5 + $0x38] sm:$0xf]
    %v402 = vld [vmem:[%s5 + $0x3c] sm:$0xf]
    %v403 = vld [vmem:[%s6] sm:$0x1]
    %v405 = vlaneseq
    %v406 = vshrl.u32 %v405, 7
    %v407 = vsub.s32 0, %v406
    %v408 = vrot.slane %v403, %v407
    %v426 = vunpack.c.l.b16 %v387
    %v427 = vunpack.c.l.b16 %v388
    %v428 = vunpack.c.l.b16 %v389
    %v429 = vunpack.c.l.b16 %v390
    %v430 = vunpack.c.l.b16 %v391
    %v431 = vunpack.c.l.b16 %v392
    %v432 = vunpack.c.l.b16 %v393
    %v433 = vunpack.c.l.b16 %v394
    %v434 = vunpack.c.l.b16 %v395
    %v435 = vunpack.c.l.b16 %v396
    %v436 = vunpack.c.l.b16 %v397
    %v437 = vunpack.c.l.b16 %v398
    %v438 = vunpack.c.l.b16 %v399
    %v439 = vunpack.c.l.b16 %v400
    %v440 = vunpack.c.l.b16 %v401
    %v441 = vunpack.c.l.b16 %v402
    %v442 = vpack.c.b16 %v427, %v426
    %v443 = vpack.c.b16 %v429, %v428
    %v444 = vpack.c.b16 %v431, %v430
    %v445 = vpack.c.b16 %v433, %v432
    %v446 = vpack.c.b16 %v435, %v434
    %v447 = vpack.c.b16 %v437, %v436
    %v448 = vpack.c.b16 %v439, %v438
    %v449 = vpack.c.b16 %v441, %v440
    %458 = vmatprep.subr.bf16.mxu0 0
    %459 = vmatpush1.bf16.msra.mxu0 %v449
    %460 = vmatprep.subr.bf16.mxu0 0
    %461 = vmatpush1.bf16.msra.mxu0 %v448
    %462 = vmatprep.subr.bf16.mxu0 0
    %463 = vmatpush1.bf16.msra.mxu0 %v447
    %464 = vmatprep.subr.bf16.mxu0 0
    %465 = vmatpush1.bf16.msra.mxu0 %v446
    %466 = vmatprep.subr.bf16.mxu0 0
    %467 = vmatpush1.bf16.msra.mxu0 %v445
    %468 = vmatprep.subr.bf16.mxu0 0
    %469 = vmatpush1.bf16.msra.mxu0 %v444
    %470 = vmatprep.subr.bf16.mxu0 0
    %471 = vmatpush1.bf16.msra.mxu0 %v443
    %472 = vmatprep.subr.bf16.mxu0 0
    %473 = vmatpush1.bf16.msra.mxu0 %v442
    %474 = vmatprep.subr.bf16.mxu0 0
    %475 = vmatpush2.bf16.msra.mxu0 0
    %476 = vmatprep.subr.bf16.mxu0 0
    %477 = vmatpush2.bf16.msra.mxu0 0
    %478 = vmatprep.subr.bf16.mxu0 0
    %479 = vmatpush2.bf16.msra.mxu0 0
    %480 = vmatprep.subr.bf16.mxu0 0
    %481 = vmatpush2.bf16.msra.mxu0 0
    %482 = vmatprep.subr.bf16.mxu0 0
    %483 = vmatpush2.bf16.msra.mxu0 0
    %484 = vmatprep.subr.bf16.mxu0 0
    %485 = vmatpush2.bf16.msra.mxu0 0
    %486 = vmatprep.subr.bf16.mxu0 0
    %487 = vmatpush2.bf16.msra.mxu0 0
    %488 = vmatprep.subr.bf16.mxu0 0
    %489 = vmatpush2.bf16.msra.mxu0 0
    %490 = vmatprep.mubr.bf16.mxu0 0
    %491 = vmatmul.mubr.bf16.gmra.mxu0 %v386
    %v492 = vpop.f32.mrf.mxu0
    %v493 = vadd.f32 %v408, %v492
    %v494 = vpop.f32.mrf.mxu0
    %v495 = vpop.f32.mrf.mxu0
    %v496 = vpop.f32.mrf.mxu0
    %497 = vdwg.mxu0
    %v498 = vsub.f32 0.0, %v493
    %v499 = vmul.f32 %v498, 1.442695
    %v500 = vpow.pop %v499
    %v501 = vadd.f32 %v500, 1.0
    %v502 = vrcp.pop %v501
    %v503 = vmul.f32 1.0, %v502
    %vm504 = vcmask 27648
    %505 = vst.msk [vmem:[#allocation7] sm:$0xf] %vm504, %v503
    // Predicated region
    $region38: #{tpu_custom_call.1} parent=1 // pred_check
      _
    $region39: #{tpu_custom_call.1} parent=1 // pred_check_branch
      %507 = sbr.rel (0) target = $region41
    $region40: #{tpu_custom_call.1} parent=1 // pred_region
      %s509 = ssub.s32 64, 64
      %510 = vsyncadd [#allocation4], %s509
      %s512 = sshll.u32 [#allocation7], 4
      %s513 = int_to_ptr.vmem [resolvable:$true] %s512
      %515 = dma.vmem_to_hbm [thread:$0]  %s513, 64, %s7, [#allocation4]
    $region41: #{tpu_custom_call.1} parent=1 // pred_fallthru
      _
    // Predicated region
    $region42: #{tpu_custom_call.1} parent=1 // pred_check
      _
    $region43: #{tpu_custom_call.1} parent=1 // pred_check_branch
      %517 = sbr.rel (0) target = $region45
    $region44: #{tpu_custom_call.1} parent=1 // pred_region
      %518 = dma.done [#allocation4], 64
    $region45: #{tpu_custom_call.1} parent=1 // pred_fallthru
      _
    %519 = vsyncpa [#allocation3], 1
    %520 = vsyncpa [#allocation6], 1
    %521 = vsyncpa [#allocation4], 1

</llo_original>
